<compile_context>
chip_gen: v5e
topology: v5e:2x2
jax: 0.10.0
libtpu: 0.0.40
codegen_flags: <defaults>
</compile_context>

<pallas_src>
import math
import numpy as np

import jax
import jax.numpy as jnp
from jax import lax
from jax.experimental import pallas as pl
from jax.experimental.pallas import tpu as pltpu  # noqa: F401  (used if this scales up)

# ---- model hyper-params (consistent with norm_shape = [32]) ----
H = 32             # num_hiddens / key_size / query_size / value_size / ffn_num_input
NUM_HEADS = 4
HEAD_DIM = H // NUM_HEADS
FFN_HID = 64       # ffn_num_hiddens
B = 2              # batch
S = 8              # sequence length
BS = B * S         # batch folded into rows
LN_EPS = 1e-5
SCALE = 1.0 / math.sqrt(HEAD_DIM)

# ---- constant masks, hoisted out of the kernel (no runtime iota/compare work) ----
# HEAD_MASK[h*BS + r, c] = 1.0 iff feature column c belongs to head h.
_hm = (np.arange(NUM_HEADS * BS)[:, None] // BS ==
       np.arange(H)[None, :] // HEAD_DIM).astype(np.float32)              # (64, 32)
HEAD_MASK = jnp.asarray(_hm)                                              # (64, 32)
# MASK_A selects the masked-V lanes, MASK_B injects the head indicator into the
# augmented lanes [H:2H] (these become the softmax denominator after p @ v_aug).
MASK_A = jnp.asarray(np.concatenate([_hm, np.zeros_like(_hm)], axis=1))   # (64, 64)
MASK_B = jnp.asarray(np.concatenate([np.zeros_like(_hm), _hm], axis=1))   # (64, 64)


def _encoder_block_kernel(
    x_ref,                    # (BS, H)        f32 activations, batch folded into rows
    bias_ref,                 # (BS, 4*BS)     attention mask values: 0 / -1e6 / -1e9
    hmask_ref,                # (4*BS, H)      per-head feature mask (constant)
    maska_ref, maskb_ref,     # (4*BS, 2*H)    augmented-V selector masks (constant)
    wqkv_ref,                 # (H, 4*H)       fused Wq | Wk | Wv | Wv (use_bias=False)
    wo_ref,                   # (H, H)
    g1_ref, be1_ref,          # (1, H)         layernorm-1 gamma / beta
    w1_ref, b1_ref,           # (H, FFN_HID), (1, FFN_HID)
    w2_ref, b2_ref,           # (FFN_HID, H), (1, H)
    g2_ref, be2_ref,          # (1, H)         layernorm-2 gamma / beta
    o_ref,                    # (BS, H)
):
    f32 = jnp.float32
    x = x_ref[...]                                                    # (16, 32)

    # ---- fused Q/K/V(/V) projection: one 128-lane-wide MXU push ----
    qkv = jnp.dot(x, wqkv_ref[...], preferred_element_type=f32)       # (16, 128)
    q = qkv[:, 0 * H:1 * H]                                           # (16, 32)
    k = qkv[:, 1 * H:2 * H]                                           # (16, 32)
    v2 = qkv[:, 2 * H:4 * H]                                          # (16, 64) = [V | V]

    # ---- all-heads scores in one matmul (no per-head loop) ----
    # k_exp row h*BS + r carries K[r] with features outside head h zeroed.
    k_exp = jnp.concatenate([k, k, k, k], axis=0) * hmask_ref[...]    # (64, 32)
    s = lax.dot_general(q, k_exp, (((1,), (1,)), ((), ())),
                        preferred_element_type=f32) * SCALE           # (16, 64)

    # Masking (precomputed in the wrapper): 0 keeps the score, -1e6 marks
    # same-batch-but-beyond-valid_len (d2l masked_softmax fill), -1e9 marks
    # cross-batch keys.  Replacement (not add) preserves d2l semantics even for
    # the degenerate valid_len == 0 case (uniform over the 8 same-batch keys).
    bias = bias_ref[...]
    s = jnp.where(bias == 0.0, s, bias)

    # Row-wide max is constant within every head segment -> valid stabilizer.
    p = jnp.exp(s - jnp.max(s, axis=-1, keepdims=True))               # (16, 64)

    # ---- fused prob@V + denominator: ONE matmul ----
    # v_aug lanes [0:H]  = per-head-masked V  (numerator)
    # v_aug lanes [H:2H] = head indicator     (per-head softmax denominator)
    v_tile = jnp.concatenate([v2, v2, v2, v2], axis=0)                # (64, 64)
    v_aug = v_tile * maska_ref[...] + maskb_ref[...]                  # (64, 64)
    ov = jnp.dot(p, v_aug, preferred_element_type=f32)                # (16, 64)
    attn = ov[:, :H] / ov[:, H:]                                      # exact divide

    attn_out = jnp.dot(attn, wo_ref[...], preferred_element_type=f32)

    # ---- AddNorm 1 (dropout is identity at eval) ----
    y = attn_out + x
    mu = jnp.mean(y, axis=-1, keepdims=True)
    var = jnp.mean((y - mu) ** 2, axis=-1, keepdims=True)
    y1 = (y - mu) * lax.rsqrt(var + LN_EPS) * g1_ref[...] + be1_ref[...]

    # ---- Positionwise FFN ----
    h1 = jnp.maximum(
        jnp.dot(y1, w1_ref[...], preferred_element_type=f32) + b1_ref[...], 0.0)
    f = jnp.dot(h1, w2_ref[...], preferred_element_type=f32) + b2_ref[...]

    # ---- AddNorm 2 ----
    z = f + y1
    mu2 = jnp.mean(z, axis=-1, keepdims=True)
    var2 = jnp.mean((z - mu2) ** 2, axis=-1, keepdims=True)
    y2 = (z - mu2) * lax.rsqrt(var2 + LN_EPS) * g2_ref[...] + be2_ref[...]

    o_ref[...] = y2.astype(o_ref.dtype)


@jax.jit
def encoder_block(x, valid_lens, params):
    """x: (B, S, H) f32, valid_lens: (B,) int32."""
    Bq, Sq, Hq = x.shape
    bs = Bq * Sq
    x2d = x.reshape(bs, Hq)                       # fold batch into matmul M dim (free)

    # Attention mask values, built once per call in the wrapper (review item 3):
    #   0    : same batch & key position < valid_len   (keep score)
    #  -1e6  : same batch, key >= valid_len            (d2l masked_softmax fill)
    #  -1e9  : cross-batch key (folded-batch separation)
    key_col = jnp.arange(NUM_HEADS * bs) % bs                          # (64,)
    row_batch = jnp.arange(bs) // Sq                                   # (16,)
    same_batch = row_batch[:, None] == (key_col[None, :] // Sq)
    in_len = (key_col[None, :] % Sq) < valid_lens.astype(jnp.int32)[row_batch][:, None]
    bias = jnp.where(same_batch & in_len, 0.0,
                     jnp.where(same_batch, -1e6, -1e9)).astype(jnp.float32)   # (16, 64)

    out2d = pl.pallas_call(
        _encoder_block_kernel,
        out_shape=jax.ShapeDtypeStruct((bs, Hq), jnp.float32),
        # No grid: single invocation, every operand is a full-array VMEM block, so
        # weights are DMA'd exactly once and there is no per-step pipeline overhead.
        # (If rows/layers scale up, add a row-tile grid axis with
        #  dimension_semantics=("parallel",) to engage the second v7x TensorCore.)
    )(
        x2d, bias, HEAD_MASK, MASK_A, MASK_B,
        params["wqkv"], params["wo"],
        params["g1"], params["be1"],
        params["w1"], params["b1"],
        params["w2"], params["b2"],
        params["g2"], params["be2"],
    )
    return out2d.reshape(Bq, Sq, Hq)


def _init_params(key):
    ks = jax.random.split(key, 10)
    scale = 0.1
    wq = scale * jax.random.normal(ks[0], (H, H), jnp.float32)
    wk = scale * jax.random.normal(ks[1], (H, H), jnp.float32)
    wv = scale * jax.random.normal(ks[2], (H, H), jnp.float32)
    return {
        "wq": wq, "wk": wk, "wv": wv,
        # Fused projection weight built ONCE at init time (review item 5); Wv is
        # duplicated so the kernel gets V pre-replicated across two lane halves.
        "wqkv": jnp.concatenate([wq, wk, wv, wv], axis=1),             # (H, 4H)
        "wo": scale * jax.random.normal(ks[3], (H, H), jnp.float32),
        # LayerNorm default init: weight=1, bias=0
        "g1": jnp.ones((1, H), jnp.float32),
        "be1": jnp.zeros((1, H), jnp.float32),
        "w1": scale * jax.random.normal(ks[4], (H, FFN_HID), jnp.float32),
        "b1": scale * jax.random.normal(ks[5], (1, FFN_HID), jnp.float32),
        "w2": scale * jax.random.normal(ks[6], (FFN_HID, H), jnp.float32),
        "b2": scale * jax.random.normal(ks[7], (1, H), jnp.float32),
        "g2": jnp.ones((1, H), jnp.float32),
        "be2": jnp.zeros((1, H), jnp.float32),
    }


def _reference(x, valid_lens, p):
    """Pure-JAX reference of the same forward (eval mode, dropout = identity)."""
    q = x @ p["wq"]; k = x @ p["wk"]; v = x @ p["wv"]
    def split(t):  # (B,S,H) -> (B,nh,S,dh)
        return t.reshape(B, S, NUM_HEADS, HEAD_DIM).transpose(0, 2, 1, 3)
    qh, kh, vh = split(q), split(k), split(v)
    scores = jnp.einsum("bhqd,bhkd->bhqk", qh, kh) / math.sqrt(HEAD_DIM)
    mask = (jnp.arange(S)[None, None, None, :] < valid_lens[:, None, None, None])
    scores = jnp.where(mask, scores, -1e6)
    attn = jax.nn.softmax(scores, axis=-1)
    out = jnp.einsum("bhqk,bhkd->bhqd", attn, vh).transpose(0, 2, 1, 3).reshape(B, S, H)
    out = out @ p["wo"]
    def ln(t, g, b):
        mu = t.mean(-1, keepdims=True)
        var = ((t - mu) ** 2).mean(-1, keepdims=True)
        return (t - mu) / jnp.sqrt(var + LN_EPS) * g + b
    y1 = ln(out + x, p["g1"], p["be1"])
    f = jnp.maximum(y1 @ p["w1"] + p["b1"], 0.0) @ p["w2"] + p["b2"]
    return ln(f + y1, p["g2"], p["be2"])


if __name__ == "__main__":
    key = jax.random.PRNGKey(0)
    kx, kp = jax.random.split(key)
    x = jax.random.normal(kx, (B, S, H), jnp.float32)
    valid_lens = jnp.array([3, 6], dtype=jnp.int32)   # per-batch valid lengths
    params = _init_params(kp)

    out = encoder_block(x, valid_lens, params)
    out = jax.block_until_ready(out)

    ref = _reference(x, valid_lens, params)
    assert out.shape == (B, S, H)
    # Tolerance bounded by default TPU matmul precision in BOTH the kernel and the
    # XLA reference (softmax normalization is now an exact divide, not approx).
    assert jnp.allclose(out, ref, atol=5e-3, rtol=5e-3), "mismatch vs JAX reference"
    print("KERNEL_OK")
</pallas_src>

<mosaic_0001>
module attributes {stable_mosaic.version = 11 : i64} {
  func.func @_encoder_block_kernel(%arg0: memref<16x32xf32, #tpu.memory_space<vmem>>, %arg1: memref<16x64xf32, #tpu.memory_space<vmem>>, %arg2: memref<64x32xf32, #tpu.memory_space<vmem>>, %arg3: memref<64x64xf32, #tpu.memory_space<vmem>>, %arg4: memref<64x64xf32, #tpu.memory_space<vmem>>, %arg5: memref<32x128xf32, #tpu.memory_space<vmem>>, %arg6: memref<32x32xf32, #tpu.memory_space<vmem>>, %arg7: memref<1x32xf32, #tpu.memory_space<vmem>>, %arg8: memref<1x32xf32, #tpu.memory_space<vmem>>, %arg9: memref<32x64xf32, #tpu.memory_space<vmem>>, %arg10: memref<1x64xf32, #tpu.memory_space<vmem>>, %arg11: memref<64x32xf32, #tpu.memory_space<vmem>>, %arg12: memref<1x32xf32, #tpu.memory_space<vmem>>, %arg13: memref<1x32xf32, #tpu.memory_space<vmem>>, %arg14: memref<1x32xf32, #tpu.memory_space<vmem>>, %arg15: memref<16x32xf32, #tpu.memory_space<vmem>>) attributes {dimension_semantics = [], scalar_prefetch = 0 : i64, scratch_operands = 0 : i64, tpu.core_type = #tpu.core_type<tc>} {
    %c0 = arith.constant 0 : index
    %c0_0 = arith.constant 0 : index
    %0 = vector.load %arg0[%c0, %c0_0] : memref<16x32xf32, #tpu.memory_space<vmem>>, vector<16x32xf32>
    %c0_1 = arith.constant 0 : index
    %c0_2 = arith.constant 0 : index
    %1 = vector.load %arg5[%c0_1, %c0_2] : memref<32x128xf32, #tpu.memory_space<vmem>>, vector<32x128xf32>
    %cst = arith.constant dense<0.000000e+00> : vector<16x128xf32>
    %2 = tpu.matmul %0, %1, %cst {dimension_numbers = #tpu.dot_dimension_numbers<[1], [0], [0], [1], [0, 0, 1, 1], [], []>} : vector<16x32xf32>, vector<32x128xf32>, vector<16x128xf32> -> vector<16x128xf32>
    %3 = vector.extract_strided_slice %2 {offsets = [0, 0], sizes = [16, 32], strides = [1, 1]} : vector<16x128xf32> to vector<16x32xf32>
    %4 = vector.extract_strided_slice %2 {offsets = [0, 32], sizes = [16, 32], strides = [1, 1]} : vector<16x128xf32> to vector<16x32xf32>
    %5 = vector.extract_strided_slice %2 {offsets = [0, 64], sizes = [16, 64], strides = [1, 1]} : vector<16x128xf32> to vector<16x64xf32>
    %6 = tpu.concatenate %4, %4, %4, %4 in 0 : vector<16x32xf32>, vector<16x32xf32>, vector<16x32xf32>, vector<16x32xf32> -> vector<64x32xf32>
    %c0_3 = arith.constant 0 : index
    %c0_4 = arith.constant 0 : index
    %7 = vector.load %arg2[%c0_3, %c0_4] : memref<64x32xf32, #tpu.memory_space<vmem>>, vector<64x32xf32>
    %8 = arith.mulf %6, %7 : vector<64x32xf32>
    %cst_5 = arith.constant dense<0.000000e+00> : vector<16x64xf32>
    %9 = tpu.matmul %3, %8, %cst_5 {dimension_numbers = #tpu.dot_dimension_numbers<[1], [1], [0], [0], [0, 0, 1, 0], [], []>} : vector<16x32xf32>, vector<64x32xf32>, vector<16x64xf32> -> vector<16x64xf32>
    %cst_6 = arith.constant 0.353553385 : f32
    %10 = vector.broadcast %cst_6 : f32 to vector<16x64xf32>
    %11 = arith.mulf %9, %10 : vector<16x64xf32>
    %c0_7 = arith.constant 0 : index
    %c0_8 = arith.constant 0 : index
    %12 = vector.load %arg1[%c0_7, %c0_8] : memref<16x64xf32, #tpu.memory_space<vmem>>, vector<16x64xf32>
    %cst_9 = arith.constant 0.000000e+00 : f32
    %13 = vector.broadcast %cst_9 : f32 to vector<16x64xf32>
    %14 = arith.cmpf oeq, %12, %13 : vector<16x64xf32>
    %15 = arith.select %14, %11, %12 : vector<16x64xi1>, vector<16x64xf32>
    %cst_10 = arith.constant dense<0xFF800000> : vector<16xf32>
    %16 = vector.multi_reduction <maximumf>, %15, %cst_10 [1] : vector<16x64xf32> to vector<16xf32>
    %17 = vector.shape_cast %16 : vector<16xf32> to vector<16x1xf32>
    %18 = vector.broadcast %17 : vector<16x1xf32> to vector<16x64xf32>
    %19 = arith.subf %15, %18 : vector<16x64xf32>
    %20 = math.exp %19 : vector<16x64xf32>
    %21 = tpu.concatenate %5, %5, %5, %5 in 0 : vector<16x64xf32>, vector<16x64xf32>, vector<16x64xf32>, vector<16x64xf32> -> vector<64x64xf32>
    %c0_11 = arith.constant 0 : index
    %c0_12 = arith.constant 0 : index
    %22 = vector.load %arg3[%c0_11, %c0_12] : memref<64x64xf32, #tpu.memory_space<vmem>>, vector<64x64xf32>
    %23 = arith.mulf %21, %22 : vector<64x64xf32>
    %c0_13 = arith.constant 0 : index
    %c0_14 = arith.constant 0 : index
    %24 = vector.load %arg4[%c0_13, %c0_14] : memref<64x64xf32, #tpu.memory_space<vmem>>, vector<64x64xf32>
    %25 = arith.addf %23, %24 : vector<64x64xf32>
    %cst_15 = arith.constant dense<0.000000e+00> : vector<16x64xf32>
    %26 = tpu.matmul %20, %25, %cst_15 {dimension_numbers = #tpu.dot_dimension_numbers<[1], [0], [0], [1], [0, 0, 1, 1], [], []>} : vector<16x64xf32>, vector<64x64xf32>, vector<16x64xf32> -> vector<16x64xf32>
    %27 = vector.extract_strided_slice %26 {offsets = [0, 0], sizes = [16, 32], strides = [1, 1]} : vector<16x64xf32> to vector<16x32xf32>
    %28 = vector.extract_strided_slice %26 {offsets = [0, 32], sizes = [16, 32], strides = [1, 1]} : vector<16x64xf32> to vector<16x32xf32>
    %29 = arith.divf %27, %28 : vector<16x32xf32>
    %c0_16 = arith.constant 0 : index
    %c0_17 = arith.constant 0 : index
    %30 = vector.load %arg6[%c0_16, %c0_17] : memref<32x32xf32, #tpu.memory_space<vmem>>, vector<32x32xf32>
    %cst_18 = arith.constant dense<0.000000e+00> : vector<16x32xf32>
    %31 = tpu.matmul %29, %30, %cst_18 {dimension_numbers = #tpu.dot_dimension_numbers<[1], [0], [0], [1], [0, 0, 1, 1], [], []>} : vector<16x32xf32>, vector<32x32xf32>, vector<16x32xf32> -> vector<16x32xf32>
    %32 = arith.addf %31, %0 : vector<16x32xf32>
    %cst_19 = arith.constant dense<0.000000e+00> : vector<16xf32>
    %33 = vector.multi_reduction <add>, %32, %cst_19 [1] : vector<16x32xf32> to vector<16xf32>
    %34 = vector.shape_cast %33 : vector<16xf32> to vector<16x1xf32>
    %cst_20 = arith.constant 3.200000e+01 : f32
    %35 = vector.broadcast %cst_20 : f32 to vector<16x1xf32>
    %36 = arith.divf %34, %35 : vector<16x1xf32>
    %37 = vector.broadcast %36 : vector<16x1xf32> to vector<16x32xf32>
    %38 = arith.subf %32, %37 : vector<16x32xf32>
    %39 = arith.mulf %38, %38 : vector<16x32xf32>
    %cst_21 = arith.constant dense<0.000000e+00> : vector<16xf32>
    %40 = vector.multi_reduction <add>, %39, %cst_21 [1] : vector<16x32xf32> to vector<16xf32>
    %41 = vector.shape_cast %40 : vector<16xf32> to vector<16x1xf32>
    %cst_22 = arith.constant 3.200000e+01 : f32
    %42 = vector.broadcast %cst_22 : f32 to vector<16x1xf32>
    %43 = arith.divf %41, %42 : vector<16x1xf32>
    %44 = vector.broadcast %36 : vector<16x1xf32> to vector<16x32xf32>
    %45 = arith.subf %32, %44 : vector<16x32xf32>
    %cst_23 = arith.constant 9.99999974E-6 : f32
    %46 = vector.broadcast %cst_23 : f32 to vector<16x1xf32>
    %47 = arith.addf %43, %46 : vector<16x1xf32>
    %48 = math.rsqrt %47 : vector<16x1xf32>
    %49 = vector.broadcast %48 : vector<16x1xf32> to vector<16x32xf32>
    %50 = arith.mulf %45, %49 : vector<16x32xf32>
    %c0_24 = arith.constant 0 : index
    %c0_25 = arith.constant 0 : index
    %51 = vector.load %arg7[%c0_24, %c0_25] : memref<1x32xf32, #tpu.memory_space<vmem>>, vector<1x32xf32>
    %52 = vector.broadcast %51 : vector<1x32xf32> to vector<16x32xf32>
    %53 = arith.mulf %50, %52 : vector<16x32xf32>
    %c0_26 = arith.constant 0 : index
    %c0_27 = arith.constant 0 : index
    %54 = vector.load %arg8[%c0_26, %c0_27] : memref<1x32xf32, #tpu.memory_space<vmem>>, vector<1x32xf32>
    %55 = vector.broadcast %54 : vector<1x32xf32> to vector<16x32xf32>
    %56 = arith.addf %53, %55 : vector<16x32xf32>
    %c0_28 = arith.constant 0 : index
    %c0_29 = arith.constant 0 : index
    %57 = vector.load %arg9[%c0_28, %c0_29] : memref<32x64xf32, #tpu.memory_space<vmem>>, vector<32x64xf32>
    %cst_30 = arith.constant dense<0.000000e+00> : vector<16x64xf32>
    %58 = tpu.matmul %56, %57, %cst_30 {dimension_numbers = #tpu.dot_dimension_numbers<[1], [0], [0], [1], [0, 0, 1, 1], [], []>} : vector<16x32xf32>, vector<32x64xf32>, vector<16x64xf32> -> vector<16x64xf32>
    %c0_31 = arith.constant 0 : index
    %c0_32 = arith.constant 0 : index
    %59 = vector.load %arg10[%c0_31, %c0_32] : memref<1x64xf32, #tpu.memory_space<vmem>>, vector<1x64xf32>
    %60 = vector.broadcast %59 : vector<1x64xf32> to vector<16x64xf32>
    %61 = arith.addf %58, %60 : vector<16x64xf32>
    %cst_33 = arith.constant 0.000000e+00 : f32
    %62 = vector.broadcast %cst_33 : f32 to vector<16x64xf32>
    %63 = arith.maximumf %61, %62 : vector<16x64xf32>
    %c0_34 = arith.constant 0 : index
    %c0_35 = arith.constant 0 : index
    %64 = vector.load %arg11[%c0_34, %c0_35] : memref<64x32xf32, #tpu.memory_space<vmem>>, vector<64x32xf32>
    %cst_36 = arith.constant dense<0.000000e+00> : vector<16x32xf32>
    %65 = tpu.matmul %63, %64, %cst_36 {dimension_numbers = #tpu.dot_dimension_numbers<[1], [0], [0], [1], [0, 0, 1, 1], [], []>} : vector<16x64xf32>, vector<64x32xf32>, vector<16x32xf32> -> vector<16x32xf32>
    %c0_37 = arith.constant 0 : index
    %c0_38 = arith.constant 0 : index
    %66 = vector.load %arg12[%c0_37, %c0_38] : memref<1x32xf32, #tpu.memory_space<vmem>>, vector<1x32xf32>
    %67 = vector.broadcast %66 : vector<1x32xf32> to vector<16x32xf32>
    %68 = arith.addf %65, %67 : vector<16x32xf32>
    %69 = arith.addf %68, %56 : vector<16x32xf32>
    %cst_39 = arith.constant dense<0.000000e+00> : vector<16xf32>
    %70 = vector.multi_reduction <add>, %69, %cst_39 [1] : vector<16x32xf32> to vector<16xf32>
    %71 = vector.shape_cast %70 : vector<16xf32> to vector<16x1xf32>
    %cst_40 = arith.constant 3.200000e+01 : f32
    %72 = vector.broadcast %cst_40 : f32 to vector<16x1xf32>
    %73 = arith.divf %71, %72 : vector<16x1xf32>
    %74 = vector.broadcast %73 : vector<16x1xf32> to vector<16x32xf32>
    %75 = arith.subf %69, %74 : vector<16x32xf32>
    %76 = arith.mulf %75, %75 : vector<16x32xf32>
    %cst_41 = arith.constant dense<0.000000e+00> : vector<16xf32>
    %77 = vector.multi_reduction <add>, %76, %cst_41 [1] : vector<16x32xf32> to vector<16xf32>
    %78 = vector.shape_cast %77 : vector<16xf32> to vector<16x1xf32>
    %cst_42 = arith.constant 3.200000e+01 : f32
    %79 = vector.broadcast %cst_42 : f32 to vector<16x1xf32>
    %80 = arith.divf %78, %79 : vector<16x1xf32>
    %81 = vector.broadcast %73 : vector<16x1xf32> to vector<16x32xf32>
    %82 = arith.subf %69, %81 : vector<16x32xf32>
    %cst_43 = arith.constant 9.99999974E-6 : f32
    %83 = vector.broadcast %cst_43 : f32 to vector<16x1xf32>
    %84 = arith.addf %80, %83 : vector<16x1xf32>
    %85 = math.rsqrt %84 : vector<16x1xf32>
    %86 = vector.broadcast %85 : vector<16x1xf32> to vector<16x32xf32>
    %87 = arith.mulf %82, %86 : vector<16x32xf32>
    %c0_44 = arith.constant 0 : index
    %c0_45 = arith.constant 0 : index
    %88 = vector.load %arg13[%c0_44, %c0_45] : memref<1x32xf32, #tpu.memory_space<vmem>>, vector<1x32xf32>
    %89 = vector.broadcast %88 : vector<1x32xf32> to vector<16x32xf32>
    %90 = arith.mulf %87, %89 : vector<16x32xf32>
    %c0_46 = arith.constant 0 : index
    %c0_47 = arith.constant 0 : index
    %91 = vector.load %arg14[%c0_46, %c0_47] : memref<1x32xf32, #tpu.memory_space<vmem>>, vector<1x32xf32>
    %92 = vector.broadcast %91 : vector<1x32xf32> to vector<16x32xf32>
    %93 = arith.addf %90, %92 : vector<16x32xf32>
    %c0_48 = arith.constant 0 : index
    %c0_49 = arith.constant 0 : index
    %94 = vector.load %arg15[%c0_48, %c0_49] : memref<16x32xf32, #tpu.memory_space<vmem>>, vector<16x32xf32>
    tpu.vector_store %arg15[%c0_48, %c0_49], %93 {strides = array<i32>} : memref<16x32xf32, #tpu.memory_space<vmem>>, vector<16x32xf32>,
    return
  }
}

</mosaic_0001>

<llo_original>
// kernel: encoder_block.1
$region0: #{encoder_block.1}
  #allocation0 [shape = 'u32[]', space=smem, size = 0x4, offset = 0x4, fixed_abs, tag = 'smem constant byte address 0x4 - core index']
  #allocation1 [shape = 'u32[72,128]{1,0:T(1,128)}', space=vmem, size = 0x9000, scoped, tag = 'internal scratch']
  %s0 = inlined_call_operand.hbm [shape: f32[16,32], index: 0, kind: input, shape index: {}]
  %s1 = inlined_call_operand.vmem [shape: f32[16,64], index: 1, kind: input, shape index: {}]
  %s2 = inlined_call_operand.hbm [shape: f32[64,32], index: 2, kind: input, shape index: {}]
  %s3 = inlined_call_operand.hbm [shape: f32[64,64], index: 3, kind: input, shape index: {}]
  %s4 = inlined_call_operand.vmem [shape: f32[64,64], index: 4, kind: input, shape index: {}]
  %s5 = inlined_call_operand.vmem [shape: f32[32,128], index: 5, kind: input, shape index: {}]
  %s6 = inlined_call_operand.hbm [shape: f32[32,32], index: 6, kind: input, shape index: {}]
  %s7 = inlined_call_operand.vmem [shape: f32[1,32], index: 7, kind: input, shape index: {}]
  %s8 = inlined_call_operand.vmem [shape: f32[1,32], index: 8, kind: input, shape index: {}]
  %s9 = inlined_call_operand.hbm [shape: f32[32,64], index: 9, kind: input, shape index: {}]
  %s10 = inlined_call_operand.vmem [shape: f32[1,64], index: 10, kind: input, shape index: {}]
  %s11 = inlined_call_operand.vmem [shape: f32[64,32], index: 11, kind: input, shape index: {}]
  %s12 = inlined_call_operand.vmem [shape: f32[1,32], index: 12, kind: input, shape index: {}]
  %s13 = inlined_call_operand.vmem [shape: f32[1,32], index: 13, kind: input, shape index: {}]
  %s14 = inlined_call_operand.vmem [shape: f32[1,32], index: 14, kind: input, shape index: {}]
  %s15 = inlined_call_operand.hbm [shape: f32[16,32], index: 15, kind: output, shape index: {}]
  %s16 = sld [smem:[#allocation0]]
  $region90: #{encoder_block.1} parent=0
    _
  %s18 = ssub.s32 1, %s16
  %s19 = scalar_select 0, %s18, %s16
  $region1: #{encoder_block.1} parent=0
    #allocation2 [shape = 'u8[8192]{0}', space=vmem, size = 0x2000, scoped, tag = 'input window, operand 0, single buffered']
    #allocation3 [shape = 's32[1]{0}', space=sflag, size = 0x4, scoped, tag = 'scoped memory for encoder_block.1']
    #allocation4 [shape = 's32[1]{0}', space=sflag, size = 0x4, scoped, tag = 'scoped memory for encoder_block.1']
    #allocation5 [shape = 'u8[32768]{0}', space=vmem, size = 0x8000, scoped, tag = 'input window, operand 2, single buffered']
    #allocation6 [shape = 's32[1]{0}', space=sflag, size = 0x4, scoped, tag = 'scoped memory for encoder_block.1']
    #allocation7 [shape = 'u8[32768]{0}', space=vmem, size = 0x8000, scoped, tag = 'input window, operand 3, single buffered']
    #allocation8 [shape = 'u8[16384]{0}', space=vmem, size = 0x4000, scoped, tag = 'input window, operand 6, single buffered']
    #allocation9 [shape = 's32[1]{0}', space=sflag, size = 0x4, scoped, tag = 'scoped memory for encoder_block.1']
    #allocation10 [shape = 'u8[16384]{0}', space=vmem, size = 0x4000, scoped, tag = 'input window, operand 9, single buffered']
    #allocation11 [shape = 'u8[8192]{0}', space=vmem, size = 0x2000, scoped, tag = 'output window, operand 0, single buffered']
    %20 = vsyncpa [#allocation3], 0
    %21 = vsyncpa [#allocation6], 0
    %22 = vsyncpa [#allocation9], 0
    %23 = vsyncpa [#allocation4], 0
    // Predicated region
    $region2: #{encoder_block.1} parent=1 // pred_check
      _
    $region3: #{encoder_block.1} parent=1 // pred_check_branch
      %25 = sbr.rel (0) target = $region5
    $region4: #{encoder_block.1} parent=1 // pred_region
      %27 = vsyncadd [#allocation3], 0
      %s28 = sshll.u32 %s0, 4
      %s29 = int_to_ptr.hbm [resolvable:$true] %s28
      %s30 = sshll.u32 [#allocation2], 4
      %s31 = int_to_ptr.vmem [resolvable:$true] %s30
      %36 = dma.hbm_to_vmem [thread:$0]  %s29, 256, %s31, [#allocation3], 128, 128, 8
    $region5: #{encoder_block.1} parent=1 // pred_fallthru
      _
    // Predicated region
    $region6: #{encoder_block.1} parent=1 // pred_check
      _
    $region7: #{encoder_block.1} parent=1 // pred_check_branch
      %38 = sbr.rel (0) target = $region9
    $region8: #{encoder_block.1} parent=1 // pred_region
      _
    $region9: #{encoder_block.1} parent=1 // pred_fallthru
      _
    // Predicated region
    $region10: #{encoder_block.1} parent=1 // pred_check
      _
    $region11: #{encoder_block.1} parent=1 // pred_check_branch
      %40 = sbr.rel (0) target = $region13
    $region12: #{encoder_block.1} parent=1 // pred_region
      %42 = vsyncadd [#allocation6], 0
      %s43 = sshll.u32 %s2, 4
      %s44 = int_to_ptr.hbm [resolvable:$true] %s43
      %s45 = sshll.u32 [#allocation5], 4
      %s46 = int_to_ptr.vmem [resolvable:$true] %s45
      %51 = dma.hbm_to_vmem [thread:$0]  %s44, 1024, %s46, [#allocation6], 128, 128, 8
    $region13: #{encoder_block.1} parent=1 // pred_fallthru
      _
    // Predicated region
    $region14: #{encoder_block.1} parent=1 // pred_check
      _
    $region15: #{encoder_block.1} parent=1 // pred_check_branch
      %53 = sbr.rel (0) target = $region17
    $region16: #{encoder_block.1} parent=1 // pred_region
      %55 = vsyncadd [#allocation6], 0
      %s56 = sshll.u32 %s3, 4
      %s57 = int_to_ptr.hbm [resolvable:$true] %s56
      %s58 = sshll.u32 [#allocation7], 4
      %s59 = int_to_ptr.vmem [resolvable:$true] %s58
      %64 = dma.hbm_to_vmem [thread:$0]  %s57, 1024, %s59, [#allocation6], 128, 128, 8
    $region17: #{encoder_block.1} parent=1 // pred_fallthru
      _
    // Predicated region
    $region18: #{encoder_block.1} parent=1 // pred_check
      _
    $region19: #{encoder_block.1} parent=1 // pred_check_branch
      %66 = sbr.rel (0) target = $region21
    $region20: #{encoder_block.1} parent=1 // pred_region
      _
    $region21: #{encoder_block.1} parent=1 // pred_fallthru
      _
    // Predicated region
    $region22: #{encoder_block.1} parent=1 // pred_check
      _
    $region23: #{encoder_block.1} parent=1 // pred_check_branch
      %68 = sbr.rel (0) target = $region25
    $region24: #{encoder_block.1} parent=1 // pred_region
      _
    $region25: #{encoder_block.1} parent=1 // pred_fallthru
      _
    // Predicated region
    $region26: #{encoder_block.1} parent=1 // pred_check
      _
    $region27: #{encoder_block.1} parent=1 // pred_check_branch
      %70 = sbr.rel (0) target = $region29
    $region28: #{encoder_block.1} parent=1 // pred_region
      %72 = vsyncadd [#allocation9], 0
      %s73 = sshll.u32 %s6, 4
      %s74 = int_to_ptr.hbm [resolvable:$true] %s73
      %s75 = sshll.u32 [#allocation8], 4
      %s76 = int_to_ptr.vmem [resolvable:$true] %s75
      %81 = dma.hbm_to_vmem [thread:$0]  %s74, 512, %s76, [#allocation9], 128, 128, 8
    $region29: #{encoder_block.1} parent=1 // pred_fallthru
      _
    // Predicated region
    $region30: #{encoder_block.1} parent=1 // pred_check
      _
    $region31: #{encoder_block.1} parent=1 // pred_check_branch
      %83 = sbr.rel (0) target = $region33
    $region32: #{encoder_block.1} parent=1 // pred_region
      _
    $region33: #{encoder_block.1} parent=1 // pred_fallthru
      _
    // Predicated region
    $region34: #{encoder_block.1} parent=1 // pred_check
      _
    $region35: #{encoder_block.1} parent=1 // pred_check_branch
      %85 = sbr.rel (0) target = $region37
    $region36: #{encoder_block.1} parent=1 // pred_region
      _
    $region37: #{encoder_block.1} parent=1 // pred_fallthru
      _
    // Predicated region
    $region38: #{encoder_block.1} parent=1 // pred_check
      _
    $region39: #{encoder_block.1} parent=1 // pred_check_branch
      %87 = sbr.rel (0) target = $region41
    $region40: #{encoder_block.1} parent=1 // pred_region
      %89 = vsyncadd [#allocation9], 0
      %s90 = sshll.u32 %s9, 4
      %s91 = int_to_ptr.hbm [resolvable:$true] %s90
      %s92 = sshll.u32 [#allocation10], 4
      %s93 = int_to_ptr.vmem [resolvable:$true] %s92
      %98 = dma.hbm_to_vmem [thread:$0]  %s91, 512, %s93, [#allocation9], 128, 128, 8
    $region41: #{encoder_block.1} parent=1 // pred_fallthru
      _
    // Predicated region
    $region42: #{encoder_block.1} parent=1 // pred_check
      _
    $region43: #{encoder_block.1} parent=1 // pred_check_branch
      %100 = sbr.rel (0) target = $region45
    $region44: #{encoder_block.1} parent=1 // pred_region
      _
    $region45: #{encoder_block.1} parent=1 // pred_fallthru
      _
    // Predicated region
    $region46: #{encoder_block.1} parent=1 // pred_check
      _
    $region47: #{encoder_block.1} parent=1 // pred_check_branch
      %102 = sbr.rel (0) target = $region49
    $region48: #{encoder_block.1} parent=1 // pred_region
      _
    $region49: #{encoder_block.1} parent=1 // pred_fallthru
      _
    // Predicated region
    $region50: #{encoder_block.1} parent=1 // pred_check
      _
    $region51: #{encoder_block.1} parent=1 // pred_check_branch
      %104 = sbr.rel (0) target = $region53
    $region52: #{encoder_block.1} parent=1 // pred_region
      _
    $region53: #{encoder_block.1} parent=1 // pred_fallthru
      _
    // Predicated region
    $region54: #{encoder_block.1} parent=1 // pred_check
      _
    $region55: #{encoder_block.1} parent=1 // pred_check_branch
      %106 = sbr.rel (0) target = $region57
    $region56: #{encoder_block.1} parent=1 // pred_region
      _
    $region57: #{encoder_block.1} parent=1 // pred_fallthru
      _
    // Predicated region
    $region58: #{encoder_block.1} parent=1 // pred_check
      _
    $region59: #{encoder_block.1} parent=1 // pred_check_branch
      %108 = sbr.rel (0) target = $region61
    $region60: #{encoder_block.1} parent=1 // pred_region
      _
    $region61: #{encoder_block.1} parent=1 // pred_fallthru
      _
    // Predicated region
    $region62: #{encoder_block.1} parent=1 // pred_check
      _
    $region63: #{encoder_block.1} parent=1 // pred_check_branch
      %110 = sbr.rel (0) target = $region65
    $region64: #{encoder_block.1} parent=1 // pred_region
      %112 = dma.done [#allocation3], 256
    $region65: #{encoder_block.1} parent=1 // pred_fallthru
      _
    // Predicated region
    $region66: #{encoder_block.1} parent=1 // pred_check
      _
    $region67: #{encoder_block.1} parent=1 // pred_check_branch
      %114 = sbr.rel (0) target = $region69
    $region68: #{encoder_block.1} parent=1 // pred_region
      %116 = dma.done [#allocation6], 1024
    $region69: #{encoder_block.1} parent=1 // pred_fallthru
      _
    // Predicated region
    $region70: #{encoder_block.1} parent=1 // pred_check
      _
    $region71: #{encoder_block.1} parent=1 // pred_check_branch
      %118 = sbr.rel (0) target = $region73
    $region72: #{encoder_block.1} parent=1 // pred_region
      %120 = dma.done [#allocation6], 1024
    $region73: #{encoder_block.1} parent=1 // pred_fallthru
      _
    // Predicated region
    $region74: #{encoder_block.1} parent=1 // pred_check
      _
    $region75: #{encoder_block.1} parent=1 // pred_check_branch
      %122 = sbr.rel (0) target = $region77
    $region76: #{encoder_block.1} parent=1 // pred_region
      %124 = dma.done [#allocation9], 512
    $region77: #{encoder_block.1} parent=1 // pred_fallthru
      _
    // Predicated region
    $region78: #{encoder_block.1} parent=1 // pred_check
      _
    $region79: #{encoder_block.1} parent=1 // pred_check_branch
      %126 = sbr.rel (0) target = $region81
    $region80: #{encoder_block.1} parent=1 // pred_region
      %128 = dma.done [#allocation9], 512
    $region81: #{encoder_block.1} parent=1 // pred_fallthru
      _
    %v129 = vld [vmem:[#allocation2] sm:$0xff]
    %v130 = vld [vmem:[#allocation2 + $0x8] sm:$0xff]
    %v131 = vld [vmem:[%s5] sm:$0xff]
    %v132 = vld [vmem:[%s5 + $0x8] sm:$0xff]
    %v133 = vld [vmem:[%s5 + $0x10] sm:$0xff]
    %v134 = vld [vmem:[%s5 + $0x18] sm:$0xff]
    %vm135 = vcmask 261120
    %v137 = vsel %vm135, %v129, 0
    %v140 = vsel %vm135, %v130, 0
    %142 = vmatpush.msra.mxu0 0.0
    %143 = vmatpush.msra.mxu0 0.0
    %144 = vmatpush.msra.mxu0 0.0
    %145 = vmatpush.msra.mxu0 0.0
    %146 = vmatpush.msra.mxu0 0.0
    %147 = vmatpush.msra.mxu0 0.0
    %148 = vmatpush.msra.mxu0 0.0
    %149 = vmatpush.msra.mxu0 0.0
    %150 = vmatpush.msra.mxu0 0.0
    %151 = vmatpush.msra.mxu0 0.0
    %152 = vmatpush.msra.mxu0 0.0
    %153 = vmatpush.msra.mxu0 0.0
    %154 = vmatpush.msra.mxu0 %v134
    %155 = vmatpush.msra.mxu0 %v133
    %156 = vmatpush.msra.mxu0 %v132
    %157 = vmatpush.msra.mxu0 %v131
    %158 = vmatmul.f32.gmra.mxu0 %v137
    %v159 = vpop.f32.mrf.mxu0
    %v160 = vadd.f32 0.0, %v159
    %161 = vmatmul.f32.gmra.mxu0 %v140
    %v162 = vpop.f32.mrf.mxu0
    %v163 = vadd.f32 0.0, %v162
    %164 = vdwg.mxu0
    %v165 = vld [vmem:[#allocation5] sm:$0xff]
    %v166 = vld [vmem:[#allocation5 + $0x8] sm:$0xff]
    %v167 = vld [vmem:[#allocation5 + $0x10] sm:$0xff]
    %v168 = vld [vmem:[#allocation5 + $0x18] sm:$0xff]
    %v169 = vld [vmem:[#allocation5 + $0x20] sm:$0xff]
    %v170 = vld [vmem:[#allocation5 + $0x28] sm:$0xff]
    %v171 = vld [vmem:[#allocation5 + $0x30] sm:$0xff]
    %v172 = vld [vmem:[#allocation5 + $0x38] sm:$0xff]
    %181 = vrot.lane.b32.xlu0 %v165, 32
    %v182 = vpop.permute.xlu0 %181
    %183 = vrot.lane.b32.xlu0 %v166, 32
    %v184 = vpop.permute.xlu0 %183
    %185 = vrot.lane.b32.xlu0 %v167, 32
    %v186 = vpop.permute.xlu0 %185
    %187 = vrot.lane.b32.xlu0 %v168, 32
    %v188 = vpop.permute.xlu0 %187
    %189 = vrot.lane.b32.xlu0 %v169, 32
    %v190 = vpop.permute.xlu0 %189
    %191 = vrot.lane.b32.xlu0 %v170, 32
    %v192 = vpop.permute.xlu0 %191
    %193 = vrot.lane.b32.xlu0 %v171, 32
    %v194 = vpop.permute.xlu0 %193
    %195 = vrot.lane.b32.xlu0 %v172, 32
    %v196 = vpop.permute.xlu0 %195
    %v205 = vmul.f32 %v160, %v182
    %v206 = vmul.f32 %v163, %v184
    %v207 = vmul.f32 %v160, %v186
    %v208 = vmul.f32 %v163, %v188
    %v209 = vmul.f32 %v160, %v190
    %v210 = vmul.f32 %v163, %v192
    %v211 = vmul.f32 %v160, %v194
    %v212 = vmul.f32 %v163, %v196
    %221 = vrot.lane.b32.xlu0 %v205, 96
    %v222 = vpop.permute.xlu0 %221
    %223 = vrot.lane.b32.xlu0 %v206, 96
    %v224 = vpop.permute.xlu0 %223
    %225 = vrot.lane.b32.xlu0 %v207, 96
    %v226 = vpop.permute.xlu0 %225
    %227 = vrot.lane.b32.xlu0 %v208, 96
    %v228 = vpop.permute.xlu0 %227
    %229 = vrot.lane.b32.xlu0 %v209, 96
    %v230 = vpop.permute.xlu0 %229
    %231 = vrot.lane.b32.xlu0 %v210, 96
    %v232 = vpop.permute.xlu0 %231
    %233 = vrot.lane.b32.xlu0 %v211, 96
    %v234 = vpop.permute.xlu0 %233
    %235 = vrot.lane.b32.xlu0 %v212, 96
    %v236 = vpop.permute.xlu0 %235
    %v238 = vsel %vm135, %v160, 0
    %v241 = vsel %vm135, %v163, 0
    %v243 = vsel %vm135, %v222, 0
    %v245 = vsel %vm135, %v224, 0
    %v247 = vsel %vm135, %v226, 0
    %v249 = vsel %vm135, %v228, 0
    %v251 = vsel %vm135, %v230, 0
    %v253 = vsel %vm135, %v232, 0
    %v255 = vsel %vm135, %v234, 0
    %v257 = vsel %vm135, %v236, 0
    %259 = vmatpush.xpose.msra.mxu0 0.0
    %260 = vmatpush.xpose.msra.mxu0 0.0
    %261 = vmatpush.xpose.msra.mxu0 0.0
    %262 = vmatpush.xpose.msra.mxu0 0.0
    %263 = vmatpush.xpose.msra.mxu0 0.0
    %264 = vmatpush.xpose.msra.mxu0 0.0
    %265 = vmatpush.xpose.msra.mxu0 0.0
    %266 = vmatpush.xpose.msra.mxu0 0.0
    %267 = vmatpush.xpose.msra.mxu0 %v257
    %268 = vmatpush.xpose.msra.mxu0 %v255
    %269 = vmatpush.xpose.msra.mxu0 %v253
    %270 = vmatpush.xpose.msra.mxu0 %v251
    %271 = vmatpush.xpose.msra.mxu0 %v249
    %272 = vmatpush.xpose.msra.mxu0 %v247
    %273 = vmatpush.xpose.msra.mxu0 %v245
    %274 = vmatpush.xpose.msra.mxu0 %v243
    %275 = vmatmul.f32.gmra.mxu0 %v238
    %v276 = vpop.f32.mrf.mxu0
    %v277 = vadd.f32 0.0, %v276
    %278 = vmatmul.f32.gmra.mxu0 %v241
    %v279 = vpop.f32.mrf.mxu0
    %v280 = vadd.f32 0.0, %v279
    %281 = vdwg.mxu0
    %v282 = vmul.f32 %v277, 0.35355338
    %v283 = vmul.f32 %v280, 0.35355338
    %v284 = vld [vmem:[%s1] sm:$0xff]
    %v285 = vld [vmem:[%s1 + $0x8] sm:$0xff]
    %vm286 = vcmp.eq.f32.partialorder %v284, 0.0
    %vm287 = vcmp.eq.f32.partialorder %v285, 0.0
    %v288 = vsel %vm286, %v282, %v284
    %v289 = vsel %vm287, %v283, %v285
    %vm290 = vcmask 523264
    %v291 = vsel %vm290, %v288, -inf
    %292 = vmax.xlane.f32.xlu0 %v291
    %v293 = vpop.xlane.xlu0 %292
    %v294 = vsel %vm290, %v289, -inf
    %295 = vmax.xlane.f32.xlu0 %v294
    %v296 = vpop.xlane.xlu0 %295
    %v297 = vsub.f32 %v288, %v293
    %v298 = vsub.f32 %v289, %v296
    %v299 = vmul.f32 %v297, 1.442695
    %v300 = vpow.pop %v299
    %v301 = vmul.f32 %v298, 1.442695
    %v302 = vpow.pop %v301
    %v303 = vld [vmem:[#allocation7] sm:$0xff]
    %v304 = vld [vmem:[#allocation7 + $0x8] sm:$0xff]
    %v305 = vld [vmem:[#allocation7 + $0x10] sm:$0xff]
    %v306 = vld [vmem:[#allocation7 + $0x18] sm:$0xff]
    %v307 = vld [vmem:[#allocation7 + $0x20] sm:$0xff]
    %v308 = vld [vmem:[#allocation7 + $0x28] sm:$0xff]
    %v309 = vld [vmem:[#allocation7 + $0x30] sm:$0xff]
    %v310 = vld [vmem:[#allocation7 + $0x38] sm:$0xff]
    %319 = vrot.lane.b32.xlu0 %v303, 64
    %v320 = vpop.permute.xlu0 %319
    %321 = vrot.lane.b32.xlu0 %v304, 64
    %v322 = vpop.permute.xlu0 %321
    %323 = vrot.lane.b32.xlu0 %v305, 64
    %v324 = vpop.permute.xlu0 %323
    %325 = vrot.lane.b32.xlu0 %v306, 64
    %v326 = vpop.permute.xlu0 %325
    %327 = vrot.lane.b32.xlu0 %v307, 64
    %v328 = vpop.permute.xlu0 %327
    %329 = vrot.lane.b32.xlu0 %v308, 64
    %v330 = vpop.permute.xlu0 %329
    %331 = vrot.lane.b32.xlu0 %v309, 64
    %v332 = vpop.permute.xlu0 %331
    %333 = vrot.lane.b32.xlu0 %v310, 64
    %v334 = vpop.permute.xlu0 %333
    %v343 = vmul.f32 %v160, %v320
    %v344 = vmul.f32 %v163, %v322
    %v345 = vmul.f32 %v160, %v324
    %v346 = vmul.f32 %v163, %v326
    %v347 = vmul.f32 %v160, %v328
    %v348 = vmul.f32 %v163, %v330
    %v349 = vmul.f32 %v160, %v332
    %v350 = vmul.f32 %v163, %v334
    %v351 = vld [vmem:[%s4] sm:$0xff]
    %v352 = vld [vmem:[%s4 + $0x8] sm:$0xff]
    %v353 = vld [vmem:[%s4 + $0x10] sm:$0xff]
    %v354 = vld [vmem:[%s4 + $0x18] sm:$0xff]
    %v355 = vld [vmem:[%s4 + $0x20] sm:$0xff]
    %v356 = vld [vmem:[%s4 + $0x28] sm:$0xff]
    %v357 = vld [vmem:[%s4 + $0x30] sm:$0xff]
    %v358 = vld [vmem:[%s4 + $0x38] sm:$0xff]
    %367 = vrot.lane.b32.xlu0 %v351, 64
    %v368 = vpop.permute.xlu0 %367
    %369 = vrot.lane.b32.xlu0 %v352, 64
    %v370 = vpop.permute.xlu0 %369
    %371 = vrot.lane.b32.xlu0 %v353, 64
    %v372 = vpop.permute.xlu0 %371
    %373 = vrot.lane.b32.xlu0 %v354, 64
    %v374 = vpop.permute.xlu0 %373
    %375 = vrot.lane.b32.xlu0 %v355, 64
    %v376 = vpop.permute.xlu0 %375
    %377 = vrot.lane.b32.xlu0 %v356, 64
    %v378 = vpop.permute.xlu0 %377
    %379 = vrot.lane.b32.xlu0 %v357, 64
    %v380 = vpop.permute.xlu0 %379
    %381 = vrot.lane.b32.xlu0 %v358, 64
    %v382 = vpop.permute.xlu0 %381
    %v391 = vadd.f32 %v343, %v368
    %v392 = vadd.f32 %v344, %v370
    %v393 = vadd.f32 %v345, %v372
    %v394 = vadd.f32 %v346, %v374
    %v395 = vadd.f32 %v347, %v376
    %v396 = vadd.f32 %v348, %v378
    %v397 = vadd.f32 %v349, %v380
    %v398 = vadd.f32 %v350, %v382
    %407 = vrot.lane.b32.xlu0 %v391, 64
    %v408 = vpop.permute.xlu0 %407
    %409 = vrot.lane.b32.xlu0 %v392, 64
    %v410 = vpop.permute.xlu0 %409
    %411 = vrot.lane.b32.xlu0 %v393, 64
    %v412 = vpop.permute.xlu0 %411
    %413 = vrot.lane.b32.xlu0 %v394, 64
    %v414 = vpop.permute.xlu0 %413
    %415 = vrot.lane.b32.xlu0 %v395, 64
    %v416 = vpop.permute.xlu0 %415
    %417 = vrot.lane.b32.xlu0 %v396, 64
    %v418 = vpop.permute.xlu0 %417
    %419 = vrot.lane.b32.xlu0 %v397, 64
    %v420 = vpop.permute.xlu0 %419
    %421 = vrot.lane.b32.xlu0 %v398, 64
    %v422 = vpop.permute.xlu0 %421
    %v432 = vsel %vm290, %v300, 0
    %v435 = vsel %vm290, %v302, 0
    %437 = vmatpush.msra.mxu0 0.0
    %438 = vmatpush.msra.mxu0 0.0
    %439 = vmatpush.msra.mxu0 0.0
    %440 = vmatpush.msra.mxu0 0.0
    %441 = vmatpush.msra.mxu0 0.0
    %442 = vmatpush.msra.mxu0 0.0
    %443 = vmatpush.msra.mxu0 0.0
    %444 = vmatpush.msra.mxu0 0.0
    %445 = vmatpush.msra.mxu0 %v422
    %446 = vmatpush.msra.mxu0 %v420
    %447 = vmatpush.msra.mxu0 %v418
    %448 = vmatpush.msra.mxu0 %v416
    %449 = vmatpush.msra.mxu0 %v414
    %450 = vmatpush.msra.mxu0 %v412
    %451 = vmatpush.msra.mxu0 %v410
    %452 = vmatpush.msra.mxu0 %v408
    %453 = vmatmul.f32.gmra.mxu0 %v432
    %v454 = vpop.f32.mrf.mxu0
    %v455 = vadd.f32 0.0, %v454
    %456 = vmatmul.f32.gmra.mxu0 %v435
    %v457 = vpop.f32.mrf.mxu0
    %v458 = vadd.f32 0.0, %v457
    %459 = vdwg.mxu0
    %462 = vrot.lane.b32.xlu0 %v455, 96
    %v463 = vpop.permute.xlu0 %462
    %464 = vrot.lane.b32.xlu0 %v458, 96
    %v465 = vpop.permute.xlu0 %464
    %v468 = vrcp.pop %v463
    %v469 = vmul.f32 %v463, %v468
    %v470 = vsub.f32 1.0, %v469
    %v471 = vmul.f32 %v468, %v470
    %v472 = vadd.f32 %v468, %v471
    %vm473 = vweird.f32 %v463
    %vm474 = vweird.f32 %v468
    %vm475 = vmor %vm473, %vm474
    %v476 = vsel %vm475, %v468, %v472
    %v477 = vand.u32 2147483647, %v463
    %vm478 = vcmp.eq.f32.partialorder %v477, 8.507059e+37
    %v479 = vand.u32 %v463, 2147483648
    %v480 = vor.u32 1.1754944e-38, %v479
    %v481 = vsel %vm478, %v480, %v476
    %v482 = vmul.f32 %v455, %v481
    %v483 = vrcp.pop %v465
    %v484 = vmul.f32 %v465, %v483
    %v485 = vsub.f32 1.0, %v484
    %v486 = vmul.f32 %v483, %v485
    %v487 = vadd.f32 %v483, %v486
    %vm488 = vweird.f32 %v465
    %vm489 = vweird.f32 %v483
    %vm490 = vmor %vm488, %vm489
    %v491 = vsel %vm490, %v483, %v487
    %v492 = vand.u32 2147483647, %v465
    %vm493 = vcmp.eq.f32.partialorder %v492, 8.507059e+37
    %v494 = vand.u32 %v465, 2147483648
    %v495 = vor.u32 1.1754944e-38, %v494
    %v496 = vsel %vm493, %v495, %v491
    %v497 = vmul.f32 %v458, %v496
    %v498 = vld [vmem:[#allocation8] sm:$0xff]
    %v499 = vld [vmem:[#allocation8 + $0x8] sm:$0xff]
    %v500 = vld [vmem:[#allocation8 + $0x10] sm:$0xff]
    %v501 = vld [vmem:[#allocation8 + $0x18] sm:$0xff]
    %v503 = vsel %vm135, %v482, 0
    %v506 = vsel %vm135, %v497, 0
    %508 = vmatpush.msra.mxu0 0.0
    %509 = vmatpush.msra.mxu0 0.0
    %510 = vmatpush.msra.mxu0 0.0
    %511 = vmatpush.msra.mxu0 0.0
    %512 = vmatpush.msra.mxu0 0.0
    %513 = vmatpush.msra.mxu0 0.0
    %514 = vmatpush.msra.mxu0 0.0
    %515 = vmatpush.msra.mxu0 0.0
    %516 = vmatpush.msra.mxu0 0.0
    %517 = vmatpush.msra.mxu0 0.0
    %518 = vmatpush.msra.mxu0 0.0
    %519 = vmatpush.msra.mxu0 0.0
    %520 = vmatpush.msra.mxu0 %v501
    %521 = vmatpush.msra.mxu0 %v500
    %522 = vmatpush.msra.mxu0 %v499
    %523 = vmatpush.msra.mxu0 %v498
    %524 = vmatmul.f32.gmra.mxu0 %v503
    %v525 = vpop.f32.mrf.mxu0
    %v526 = vadd.f32 %v129, %v525
    %527 = vmatmul.f32.gmra.mxu0 %v506
    %v528 = vpop.f32.mrf.mxu0
    %v529 = vadd.f32 %v130, %v528
    %530 = vdwg.mxu0
    %v531 = vsel %vm135, %v526, 0.0
    %532 = vadd.xlane.f32.xlu0 %v531
    %v533 = vpop.xlane.xlu0 %532
    %v534 = vsel %vm135, %v529, 0.0
    %535 = vadd.xlane.f32.xlu0 %v534
    %v536 = vpop.xlane.xlu0 %535
    %v537 = vrcp.pop 32.0
    %v538 = vmul.f32 32.0, %v537
    %v539 = vsub.f32 1.0, %v538
    %v540 = vmul.f32 %v537, %v539
    %v541 = vadd.f32 %v537, %v540
    %vm542 = vweird.f32 %v537
    %v543 = vsel %vm542, %v537, %v541
    %v544 = vmul.f32 %v533, %v543
    %v545 = vmul.f32 %v536, %v543
    %v546 = vsub.f32 %v526, %v544
    %v547 = vsub.f32 %v529, %v545
    %v548 = vmul.f32 %v546, %v546
    %v549 = vmul.f32 %v547, %v547
    %v550 = vsel %vm135, %v548, 0.0
    %551 = vadd.xlane.f32.xlu0 %v550
    %v552 = vpop.xlane.xlu0 %551
    %v553 = vsel %vm135, %v549, 0.0
    %554 = vadd.xlane.f32.xlu0 %v553
    %v555 = vpop.xlane.xlu0 %554
    %v556 = vmul.f32 %v552, %v543
    %v557 = vmul.f32 %v555, %v543
    %v558 = vadd.f32 %v556, 1e-05
    %v559 = vadd.f32 %v557, 1e-05
    %v560 = vrsqrt.pop %v558
    %v561 = vmul.f32 %v560, %v558
    %v562 = vmul.f32 %v561, %v560
    %v563 = vmul.f32 0.5, %v562
    %v564 = vsub.f32 1.5, %v563
    %v565 = vmul.f32 %v560, %v564
    %vm566 = vweird.f32 %v558
    %vm567 = vweird.f32 %v560
    %vm568 = vmor %vm566, %vm567
    %v569 = vsel %vm568, %v560, %v565
    %v570 = vrsqrt.pop %v559
    %v571 = vmul.f32 %v570, %v559
    %v572 = vmul.f32 %v571, %v570
    %v573 = vmul.f32 0.5, %v572
    %v574 = vsub.f32 1.5, %v573
    %v575 = vmul.f32 %v570, %v574
    %vm576 = vweird.f32 %v559
    %vm577 = vweird.f32 %v570
    %vm578 = vmor %vm576, %vm577
    %v579 = vsel %vm578, %v570, %v575
    %v580 = vmul.f32 %v546, %v569
    %v581 = vmul.f32 %v547, %v579
    %v582 = vld [vmem:[%s7] sm:$0x1]
    %v584 = vperm.slane %v582, 0
    %v586 = vmul.f32 %v580, %v584
    %v587 = vmul.f32 %v581, %v584
    %v588 = vld [vmem:[%s8] sm:$0x1]
    %v590 = vperm.slane %v588, 0
    %v592 = vadd.f32 %v586, %v590
    %v593 = vadd.f32 %v587, %v590
    %v594 = vld [vmem:[#allocation10] sm:$0xff]
    %v595 = vld [vmem:[#allocation10 + $0x8] sm:$0xff]
    %v596 = vld [vmem:[#allocation10 + $0x10] sm:$0xff]
    %v597 = vld [vmem:[#allocation10 + $0x18] sm:$0xff]
    %v598 = vld [vmem:[%s10] sm:$0x1]
    %v600 = vperm.slane %v598, 0
    %v603 = vsel %vm135, %v592, 0
    %v606 = vsel %vm135, %v593, 0
    %608 = vmatpush.msra.mxu0 0.0
    %609 = vmatpush.msra.mxu0 0.0
    %610 = vmatpush.msra.mxu0 0.0
    %611 = vmatpush.msra.mxu0 0.0
    %612 = vmatpush.msra.mxu0 0.0
    %613 = vmatpush.msra.mxu0 0.0
    %614 = vmatpush.msra.mxu0 0.0
    %615 = vmatpush.msra.mxu0 0.0
    %616 = vmatpush.msra.mxu0 0.0
    %617 = vmatpush.msra.mxu0 0.0
    %618 = vmatpush.msra.mxu0 0.0
    %619 = vmatpush.msra.mxu0 0.0
    %620 = vmatpush.msra.mxu0 %v597
    %621 = vmatpush.msra.mxu0 %v596
    %622 = vmatpush.msra.mxu0 %v595
    %623 = vmatpush.msra.mxu0 %v594
    %624 = vmatmul.f32.gmra.mxu0 %v603
    %v625 = vpop.f32.mrf.mxu0
    %v626 = vadd.f32 %v600, %v625
    %627 = vmatmul.f32.gmra.mxu0 %v606
    %v628 = vpop.f32.mrf.mxu0
    %v629 = vadd.f32 %v600, %v628
    %630 = vdwg.mxu0
    %v631 = vmax.f32 %v626, 0.0
    %v632 = vmax.f32 %v629, 0.0
    %v633 = vld [vmem:[%s11] sm:$0xff]
    %v634 = vld [vmem:[%s11 + $0x8] sm:$0xff]
    %v635 = vld [vmem:[%s11 + $0x10] sm:$0xff]
    %v636 = vld [vmem:[%s11 + $0x18] sm:$0xff]
    %v637 = vld [vmem:[%s11 + $0x20] sm:$0xff]
    %v638 = vld [vmem:[%s11 + $0x28] sm:$0xff]
    %v639 = vld [vmem:[%s11 + $0x30] sm:$0xff]
    %v640 = vld [vmem:[%s11 + $0x38] sm:$0xff]
    %v641 = vld [vmem:[%s12] sm:$0x1]
    %v643 = vperm.slane %v641, 0
    %v646 = vsel %vm290, %v631, 0
    %v649 = vsel %vm290, %v632, 0
    %651 = vmatpush.msra.mxu0 0.0
    %652 = vmatpush.msra.mxu0 0.0
    %653 = vmatpush.msra.mxu0 0.0
    %654 = vmatpush.msra.mxu0 0.0
    %655 = vmatpush.msra.mxu0 0.0
    %656 = vmatpush.msra.mxu0 0.0
    %657 = vmatpush.msra.mxu0 0.0
    %658 = vmatpush.msra.mxu0 0.0
    %659 = vmatpush.msra.mxu0 %v640
    %660 = vmatpush.msra.mxu0 %v639
    %661 = vmatpush.msra.mxu0 %v638
    %662 = vmatpush.msra.mxu0 %v637
    %663 = vmatpush.msra.mxu0 %v636
    %664 = vmatpush.msra.mxu0 %v635
    %665 = vmatpush.msra.mxu0 %v634
    %666 = vmatpush.msra.mxu0 %v633
    %667 = vmatmul.f32.gmra.mxu0 %v646
    %v668 = vpop.f32.mrf.mxu0
    %v669 = vadd.f32 %v643, %v668
    %670 = vmatmul.f32.gmra.mxu0 %v649
    %v671 = vpop.f32.mrf.mxu0
    %v672 = vadd.f32 %v643, %v671
    %673 = vdwg.mxu0
    %v674 = vadd.f32 %v669, %v592
    %v675 = vadd.f32 %v672, %v593
    %v676 = vsel %vm135, %v674, 0.0
    %677 = vadd.xlane.f32.xlu0 %v676
    %v678 = vpop.xlane.xlu0 %677
    %v679 = vsel %vm135, %v675, 0.0
    %680 = vadd.xlane.f32.xlu0 %v679
    %v681 = vpop.xlane.xlu0 %680
    %v682 = vmul.f32 %v678, %v543
    %v683 = vmul.f32 %v681, %v543
    %v684 = vsub.f32 %v674, %v682
    %v685 = vsub.f32 %v675, %v683
    %v686 = vmul.f32 %v684, %v684
    %v687 = vmul.f32 %v685, %v685
    %v688 = vsel %vm135, %v686, 0.0
    %689 = vadd.xlane.f32.xlu0 %v688
    %v690 = vpop.xlane.xlu0 %689
    %v691 = vsel %vm135, %v687, 0.0
    %692 = vadd.xlane.f32.xlu0 %v691
    %v693 = vpop.xlane.xlu0 %692
    %v694 = vmul.f32 %v690, %v543
    %v695 = vmul.f32 %v693, %v543
    %v696 = vadd.f32 %v694, 1e-05
    %v697 = vadd.f32 %v695, 1e-05
    %v698 = vrsqrt.pop %v696
    %v699 = vmul.f32 %v698, %v696
    %v700 = vmul.f32 %v699, %v698
    %v701 = vmul.f32 0.5, %v700
    %v702 = vsub.f32 1.5, %v701
    %v703 = vmul.f32 %v698, %v702
    %vm704 = vweird.f32 %v696
    %vm705 = vweird.f32 %v698
    %vm706 = vmor %vm704, %vm705
    %v707 = vsel %vm706, %v698, %v703
    %v708 = vrsqrt.pop %v697
    %v709 = vmul.f32 %v708, %v697
    %v710 = vmul.f32 %v709, %v708
    %v711 = vmul.f32 0.5, %v710
    %v712 = vsub.f32 1.5, %v711
    %v713 = vmul.f32 %v708, %v712
    %vm714 = vweird.f32 %v697
    %vm715 = vweird.f32 %v708
    %vm716 = vmor %vm714, %vm715
    %v717 = vsel %vm716, %v708, %v713
    %v718 = vmul.f32 %v684, %v707
    %v719 = vmul.f32 %v685, %v717
    %v720 = vld [vmem:[%s13] sm:$0x1]
    %v722 = vperm.slane %v720, 0
    %v724 = vmul.f32 %v718, %v722
    %v725 = vmul.f32 %v719, %v722
    %v726 = vld [vmem:[%s14] sm:$0x1]
    %v728 = vperm.slane %v726, 0
    %v730 = vadd.f32 %v724, %v728
    %v731 = vadd.f32 %v725, %v728
    %732 = vst.msk [vmem:[#allocation11] sm:$0xff] %vm135, %v730
    %733 = vst.msk [vmem:[#allocation11 + $0x8] sm:$0xff] %vm135, %v731
    // Predicated region
    $region82: #{encoder_block.1} parent=1 // pred_check
      _
    $region83: #{encoder_block.1} parent=1 // pred_check_branch
      %735 = sbr.rel (0) target = $region85
    $region84: #{encoder_block.1} parent=1 // pred_region
      %737 = vsyncadd [#allocation4], 0
      %s738 = sshll.u32 [#allocation11], 4
      %s739 = int_to_ptr.vmem [resolvable:$true] %s738
      %s740 = sshll.u32 %s15, 4
      %s741 = int_to_ptr.hbm [resolvable:$true] %s740
      %746 = dma.vmem_to_hbm [thread:$0]  %s739, 256, %s741, [#allocation4], 128, 128, 8
    $region85: #{encoder_block.1} parent=1 // pred_fallthru
      _
    // Predicated region
    $region86: #{encoder_block.1} parent=1 // pred_check
      _
    $region87: #{encoder_block.1} parent=1 // pred_check_branch
      %748 = sbr.rel (0) target = $region89
    $region88: #{encoder_block.1} parent=1 // pred_region
      %750 = dma.done [#allocation4], 256
    $region89: #{encoder_block.1} parent=1 // pred_fallthru
      _
    %751 = vsyncpa [#allocation3], 1
    %752 = vsyncpa [#allocation6], 1
    %753 = vsyncpa [#allocation9], 1
    %754 = vsyncpa [#allocation4], 1

</llo_original>
